<compile_context>
chip_gen: v7x
topology: tpu7x:2x2x1
jax: 0.10.0
libtpu: 0.0.40
codegen_flags: <defaults>
</compile_context>

<pallas_src>
import jax
import jax.numpy as jnp
from jax import lax
from jax.experimental import pallas as pl
from jax.experimental.pallas import tpu as pltpu


def _extract_patches(x, patch_size, dtype=None):
    """Match torch .unfold(2,ps,ps).unfold(3,ps,ps).permute(0,2,3,1,4,5).view(B,N,-1).

    If `dtype` is given the cast is emitted on the transpose output so XLA
    fuses it into the patchify copy (no standalone cast pass over HBM).
    """
    B, C, H, W = x.shape
    ps = patch_size
    nph, npw = H // ps, W // ps
    p = x.reshape(B, C, nph, ps, npw, ps)
    p = jnp.transpose(p, (0, 2, 4, 1, 3, 5))
    if dtype is not None:
        p = p.astype(dtype)
    return p.reshape(B, nph * npw, C * ps * ps)


def _embed_kernel(p_ref, w_ref, add_ref, cls_ref, out_ref):
    # p_ref:   (bpt, N, d_in)     bf16 patches
    # w_ref:   (latent, d_in)     bf16 weight (contracted on its dim 1)
    # add_ref: (bpt, 1, latent)   f32  bias + pos_embedding (pre-folded)
    # cls_ref: (bpt, 1, latent)   f32  class_token + pos_embedding
    # out_ref: (bpt, N+1, latent) f32  full sequence (row 0 = class token)
    bpt, n, d_in = p_ref.shape
    latent = w_ref.shape[0]
    # One 2-D MXU matmul: fold batch into M (bpt*N rows) instead of bpt
    # separate N-row matmuls.  f32 accumulate.
    p2d = p_ref[...].reshape(bpt * n, d_in)
    proj = lax.dot_general(
        p2d, w_ref[...],
        dimension_numbers=(((1,), (1,)), ((), ())),     # contract d_in vs d_in
        preferred_element_type=jnp.float32)             # (bpt*N, latent)
    proj = proj.reshape(bpt, n, latent) + add_ref[...]  # single broadcast VPU add
    out_ref[:, pl.ds(0, 1), :] = cls_ref[...]           # class-token row
    out_ref[:, pl.ds(1, n), :] = proj                   # projection rows


def input_embedding(x, w, b, class_token, pos_embedding, *, patch_size):
    """x: (B, C, H, W) f32.  w: (latent, d_in).  Returns (B, N+1, latent) f32."""
    B, C, H, W = x.shape
    latent, d_in = w.shape
    assert d_in == C * patch_size * patch_size

    # Patchify with the bf16 cast fused into the transpose copy.
    patches = _extract_patches(x, patch_size, dtype=jnp.bfloat16)   # (B, N, d_in)
    N = patches.shape[1]
    w_bf16 = w.astype(jnp.bfloat16)

    # Fold bias + positional embedding into one per-batch additive row and
    # precompute the class-token row (+pos).  Both (B, 1, latent) f32.
    add = (b[None, None, :] + pos_embedding).astype(jnp.float32)
    cls_row = (class_token + pos_embedding).astype(jnp.float32)

    # Grid sizing: split into 2 "parallel" steps (v7x 2-TC) only when each
    # step still keeps the MXU fed (>= 512 rows per step); otherwise a single
    # step (bpt = B) — strictly better on single-TC v5e/v6e and at toy shapes
    # where the ~600-cycle per-step pipeline overhead dominates.
    min_rows_per_step = 512
    if B % 2 == 0 and (B // 2) * N >= min_rows_per_step:
        bpt = B // 2
    else:
        bpt = B
    num_steps = B // bpt

    w_spec = pl.BlockSpec((latent, d_in), lambda i: (0, 0))
    if num_steps > 1:
        # Grid-invariant weight: single-buffer it to reclaim VMEM (most
        # valuable on v7x's 64 MiB VMEM at real ViT weight sizes).
        w_spec = pl.BlockSpec((latent, d_in), lambda i: (0, 0),
                              pipeline_mode=pl.Buffered(1))

    # TODO(synk): at production ViT sizes set vmem_limit_bytes (~48-56 MiB on
    # v7x) in CompilerParams and re-budget bpt so the double-buffered patch
    # and f32 output blocks fit; irrelevant at these toy shapes.
    out = pl.pallas_call(
        _embed_kernel,
        out_shape=jax.ShapeDtypeStruct((B, N + 1, latent), jnp.float32),
        grid_spec=pltpu.PrefetchScalarGridSpec(
            num_scalar_prefetch=0,
            grid=(num_steps,),
            in_specs=[
                pl.BlockSpec((bpt, N, d_in), lambda i: (i, 0, 0)),
                w_spec,
                pl.BlockSpec((bpt, 1, latent), lambda i: (i, 0, 0)),
                pl.BlockSpec((bpt, 1, latent), lambda i: (i, 0, 0)),
            ],
            out_specs=pl.BlockSpec((bpt, N + 1, latent), lambda i: (i, 0, 0)),
        ),
        compiler_params=pltpu.CompilerParams(
            dimension_semantics=("parallel",)),
    )(patches, w_bf16, add, cls_row)
    return out


def _reference(x, w, b, class_token, pos_embedding, *, patch_size):
    patches = _extract_patches(x, patch_size)
    proj = jnp.einsum("bnd,ld->bnl", patches, w) + b
    seq = jnp.concatenate([class_token, proj], axis=1)
    return seq + pos_embedding   # pos_embedding broadcasts over the seq dim


if __name__ == "__main__":
    # Small shapes consistent with the module:
    #   batch=2, n_channels=4, H=W=16, patch_size=4 -> N=16, input_size=64, latent=32
    batch_size = 2
    n_channels = 4
    H = W = 16
    patch_size = 4
    latent_size = 32
    input_size = patch_size * patch_size * n_channels

    key = jax.random.PRNGKey(0)
    kx, kw, kb, kc, kp = jax.random.split(key, 5)

    x = jax.random.normal(kx, (batch_size, n_channels, H, W), jnp.float32)
    # Deterministic parameter init (shapes from nn.Linear / nn.Parameter in __init__)
    w = jax.random.normal(kw, (latent_size, input_size), jnp.float32) * 0.02
    b = jax.random.normal(kb, (latent_size,), jnp.float32) * 0.02
    class_token = jax.random.normal(kc, (batch_size, 1, latent_size), jnp.float32)
    pos_embedding = jax.random.normal(kp, (batch_size, 1, latent_size), jnp.float32)

    out = input_embedding(x, w, b, class_token, pos_embedding,
                          patch_size=patch_size)
    out = jax.block_until_ready(out)

    ref = _reference(x, w, b, class_token, pos_embedding, patch_size=patch_size)
    assert out.shape == (batch_size, (H // patch_size) * (W // patch_size) + 1,
                         latent_size)
    # bf16 MXU operands (f32 accumulate) -> loosened tolerance vs. the f32 ref.
    assert jnp.allclose(out, ref, atol=2e-2, rtol=2e-2)
    print("KERNEL_OK")
</pallas_src>

<mosaic_0001>
module attributes {stable_mosaic.version = 11 : i64} {
  func.func @_embed_kernel(%arg0: i32, %arg1: memref<2x16x64xbf16, #tpu.memory_space<vmem>>, %arg2: memref<32x64xbf16, #tpu.memory_space<vmem>>, %arg3: memref<2x1x32xf32, #tpu.memory_space<vmem>>, %arg4: memref<2x1x32xf32, #tpu.memory_space<vmem>>, %arg5: memref<2x17x32xf32, #tpu.memory_space<vmem>>) attributes {dimension_semantics = [#tpu.dimension_semantics<parallel>], iteration_bounds = array<i64: 1>, scalar_prefetch = 0 : i64, scratch_operands = 0 : i64, tpu.core_type = #tpu.core_type<tc>, window_params = [{transform_indices = @transform_0, window_bounds = array<i64: 2, 16, 64>}, {pipeline_mode = #tpu.pipeline_mode<synchronous>, transform_indices = @transform_1, window_bounds = array<i64: 32, 64>}, {transform_indices = @transform_2, window_bounds = array<i64: 2, 1, 32>}, {transform_indices = @transform_3, window_bounds = array<i64: 2, 1, 32>}, {transform_indices = @transform_4, window_bounds = array<i64: 2, 17, 32>}]} {
    %c0 = arith.constant 0 : index
    %c0_0 = arith.constant 0 : index
    %c0_1 = arith.constant 0 : index
    %0 = vector.load %arg1[%c0, %c0_0, %c0_1] : memref<2x16x64xbf16, #tpu.memory_space<vmem>>, vector<2x16x64xbf16>
    %1 = vector.shape_cast %0 : vector<2x16x64xbf16> to vector<32x64xbf16>
    %c0_2 = arith.constant 0 : index
    %c0_3 = arith.constant 0 : index
    %2 = vector.load %arg2[%c0_2, %c0_3] : memref<32x64xbf16, #tpu.memory_space<vmem>>, vector<32x64xbf16>
    %cst = arith.constant dense<0.000000e+00> : vector<32x32xf32>
    %3 = tpu.matmul %1, %2, %cst {dimension_numbers = #tpu.dot_dimension_numbers<[1], [1], [0], [0], [0, 0, 1, 0], [], []>} : vector<32x64xbf16>, vector<32x64xbf16>, vector<32x32xf32> -> vector<32x32xf32>
    %4 = vector.shape_cast %3 : vector<32x32xf32> to vector<2x16x32xf32>
    %c0_4 = arith.constant 0 : index
    %c0_5 = arith.constant 0 : index
    %c0_6 = arith.constant 0 : index
    %5 = vector.load %arg3[%c0_4, %c0_5, %c0_6] : memref<2x1x32xf32, #tpu.memory_space<vmem>>, vector<2x1x32xf32>
    %6 = vector.broadcast %5 : vector<2x1x32xf32> to vector<2x16x32xf32>
    %7 = arith.addf %4, %6 : vector<2x16x32xf32>
    %c0_7 = arith.constant 0 : index
    %c0_8 = arith.constant 0 : index
    %c0_9 = arith.constant 0 : index
    %8 = vector.load %arg4[%c0_7, %c0_8, %c0_9] : memref<2x1x32xf32, #tpu.memory_space<vmem>>, vector<2x1x32xf32>
    %c0_10 = arith.constant 0 : index
    %c0_11 = arith.constant 0 : index
    %c0_12 = arith.constant 0 : index
    %9 = vector.load %arg5[%c0_10, %c0_11, %c0_12] : memref<2x17x32xf32, #tpu.memory_space<vmem>>, vector<2x1x32xf32>
    tpu.vector_store %arg5[%c0_10, %c0_11, %c0_12], %8 {strides = array<i32>} : memref<2x17x32xf32, #tpu.memory_space<vmem>>, vector<2x1x32xf32>,
    %c0_13 = arith.constant 0 : index
    %c1 = arith.constant 1 : index
    %c0_14 = arith.constant 0 : index
    %10 = vector.load %arg5[%c0_13, %c1, %c0_14] : memref<2x17x32xf32, #tpu.memory_space<vmem>>, vector<2x16x32xf32>
    tpu.vector_store %arg5[%c0_13, %c1, %c0_14], %7 {strides = array<i32>} : memref<2x17x32xf32, #tpu.memory_space<vmem>>, vector<2x16x32xf32>,
    return
  }
  func.func @transform_0(%arg0: i32) -> (i32, i32, i32) {
    %c0_i32 = arith.constant 0 : i32
    %c0_i32_0 = arith.constant 0 : i32
    %c0_i32_1 = arith.constant 0 : i32
    return %arg0, %c0_i32, %c0_i32_0 : i32, i32, i32
  }
  func.func @transform_1(%arg0: i32) -> (i32, i32) {
    %c0_i32 = arith.constant 0 : i32
    %c0_i32_0 = arith.constant 0 : i32
    %c0_i32_1 = arith.constant 0 : i32
    return %c0_i32, %c0_i32_0 : i32, i32
  }
  func.func @transform_2(%arg0: i32) -> (i32, i32, i32) {
    %c0_i32 = arith.constant 0 : i32
    %c0_i32_0 = arith.constant 0 : i32
    %c0_i32_1 = arith.constant 0 : i32
    return %arg0, %c0_i32, %c0_i32_0 : i32, i32, i32
  }
  func.func @transform_3(%arg0: i32) -> (i32, i32, i32) {
    %c0_i32 = arith.constant 0 : i32
    %c0_i32_0 = arith.constant 0 : i32
    %c0_i32_1 = arith.constant 0 : i32
    return %arg0, %c0_i32, %c0_i32_0 : i32, i32, i32
  }
  func.func @transform_4(%arg0: i32) -> (i32, i32, i32) {
    %c0_i32 = arith.constant 0 : i32
    %c0_i32_0 = arith.constant 0 : i32
    %c0_i32_1 = arith.constant 0 : i32
    return %arg0, %c0_i32, %c0_i32_0 : i32, i32, i32
  }
}

</mosaic_0001>

<llo_original>
// kernel: tpu_custom_call.1
$region0: #{tpu_custom_call.1}
  #allocation0 [shape = 'u32[]', space=smem, size = 0x4, offset = 0x4, fixed_abs, tag = 'smem constant byte address 0x4 - core index']
  #allocation1 [shape = 'u32[144,128]{1,0:T(1,128)}', space=vmem, size = 0x12000, scoped, tag = 'internal scratch']
  %s0 = inlined_call_operand.hbm [shape: bf16[2,16,64], index: 0, kind: input, shape index: {}]
  %s1 = inlined_call_operand.hbm [shape: bf16[32,64], index: 1, kind: input, shape index: {}]
  %s2 = inlined_call_operand.vmem [shape: f32[2,1,32], index: 2, kind: input, shape index: {}]
  %s3 = inlined_call_operand.vmem [shape: f32[2,1,32], index: 3, kind: input, shape index: {}]
  %s4 = inlined_call_operand.vmem [shape: f32[2,17,32], index: 4, kind: output, shape index: {}]
  %s5 = sld [smem:[#allocation0]]
  $region34: #{tpu_custom_call.1} parent=0
    _
  %s7 = ssub.s32 1, %s5
  %s8 = scalar_select 0, %s7, %s5
  $region1: #{tpu_custom_call.1} parent=0
    #allocation2 [shape = 'u8[8192]{0}', space=vmem, size = 0x2000, scoped, tag = 'input window, operand 0, single buffered']
    #allocation3 [shape = 's32[1]{0}', space=sflag, size = 0x4, scoped, tag = 'scoped memory for tpu_custom_call.1']
    #allocation4 [shape = 'u8[8192]{0}', space=vmem, size = 0x2000, scoped, tag = 'input window, operand 1, single buffered']
    #allocation5 [shape = 's32[1]{0}', space=sflag, size = 0x4, scoped, tag = 'scoped memory for tpu_custom_call.1']
    %9 = vsyncpa [#allocation3], 0
    %10 = vsyncpa [#allocation5], 0
    // Predicated region
    $region2: #{tpu_custom_call.1} parent=1 // pred_check
      _
    $region3: #{tpu_custom_call.1} parent=1 // pred_check_branch
      %12 = sbr.rel (0) target = $region5
    $region4: #{tpu_custom_call.1} parent=1 // pred_region
      %s14 = ssub.s32 256, 256
      %15 = vsyncadd [#allocation3], %s14
      %s16 = sshll.u32 [#allocation2], 4
      %s17 = int_to_ptr.vmem [resolvable:$true] %s16
      %22 = dma.hbm_to_vmem [thread:$0]  %s0, 256, %s17, [#allocation3], 64, 64, 4
    $region5: #{tpu_custom_call.1} parent=1 // pred_fallthru
      _
    // Predicated region
    $region6: #{tpu_custom_call.1} parent=1 // pred_check
      _
    $region7: #{tpu_custom_call.1} parent=1 // pred_check_branch
      %24 = sbr.rel (0) target = $region9
    $region8: #{tpu_custom_call.1} parent=1 // pred_region
      %s26 = ssub.s32 256, 256
      %27 = vsyncadd [#allocation5], %s26
      %s28 = sshll.u32 [#allocation4], 4
      %s29 = int_to_ptr.vmem [resolvable:$true] %s28
      %34 = dma.hbm_to_vmem [thread:$0]  %s1, 256, %s29, [#allocation5], 64, 64, 4
    $region9: #{tpu_custom_call.1} parent=1 // pred_fallthru
      _
    // Predicated region
    $region10: #{tpu_custom_call.1} parent=1 // pred_check
      _
    $region11: #{tpu_custom_call.1} parent=1 // pred_check_branch
      %36 = sbr.rel (0) target = $region13
    $region12: #{tpu_custom_call.1} parent=1 // pred_region
      _
    $region13: #{tpu_custom_call.1} parent=1 // pred_fallthru
      _
    // Predicated region
    $region14: #{tpu_custom_call.1} parent=1 // pred_check
      _
    $region15: #{tpu_custom_call.1} parent=1 // pred_check_branch
      %38 = sbr.rel (0) target = $region17
    $region16: #{tpu_custom_call.1} parent=1 // pred_region
      _
    $region17: #{tpu_custom_call.1} parent=1 // pred_fallthru
      _
    // Predicated region
    $region18: #{tpu_custom_call.1} parent=1 // pred_check
      _
    $region19: #{tpu_custom_call.1} parent=1 // pred_check_branch
      %40 = sbr.rel (0) target = $region21
    $region20: #{tpu_custom_call.1} parent=1 // pred_region
      %41 = dma.done [#allocation3], 256
    $region21: #{tpu_custom_call.1} parent=1 // pred_fallthru
      _
    // Predicated region
    $region22: #{tpu_custom_call.1} parent=1 // pred_check
      _
    $region23: #{tpu_custom_call.1} parent=1 // pred_check_branch
      %43 = sbr.rel (0) target = $region25
    $region24: #{tpu_custom_call.1} parent=1 // pred_region
      %44 = dma.done [#allocation5], 256
    $region25: #{tpu_custom_call.1} parent=1 // pred_fallthru
      _
    %v46 = vld [vmem:[#allocation2] sm:$0xf]
    %v47 = vld [vmem:[#allocation2 + $0x4] sm:$0xf]
    %v48 = vld [vmem:[#allocation2 + $0x8] sm:$0xf]
    %v49 = vld [vmem:[#allocation2 + $0xc] sm:$0xf]
    %v50 = vld [vmem:[#allocation4] sm:$0xf]
    %v51 = vld [vmem:[#allocation4 + $0x4] sm:$0xf]
    %v52 = vld [vmem:[#allocation4 + $0x8] sm:$0xf]
    %v53 = vld [vmem:[#allocation4 + $0xc] sm:$0xf]
    %v58 = vunpack.c.l.b16 %v46
    %v59 = vunpack.c.l.b16 %v47
    %v60 = vunpack.c.l.b16 %v48
    %v61 = vunpack.c.l.b16 %v49
    %v62 = vpack.c.b16 %v59, %v58
    %v63 = vpack.c.b16 %v61, %v60
    %v68 = vunpack.c.l.b16 %v50
    %v69 = vunpack.c.l.b16 %v51
    %v70 = vunpack.c.l.b16 %v52
    %v71 = vunpack.c.l.b16 %v53
    %v72 = vpack.c.b16 %v69, %v68
    %v73 = vpack.c.b16 %v71, %v70
    %vm74 = vcmask 523264
    %v76 = vsel %vm74, %v62, 0
    %v79 = vsel %vm74, %v63, 0
    %v82 = vsel %vm74, %v72, 0
    %v85 = vsel %vm74, %v73, 0
    %87 = vmatprep.subr.bf16.mxu0 0
    %88 = vmatpush1.bf16.xpose.msra.mxu0 %v82
    %89 = vmatprep.subr.bf16.mxu0 0
    %90 = vmatpush1.bf16.xpose.msra.mxu0 %v85
    %91 = vmatprep.subr.bf16.mxu0 0
    %92 = vmatpush1.bf16.xpose.msra.mxu0 0
    %93 = vmatprep.subr.bf16.mxu0 0
    %94 = vmatpush1.bf16.xpose.msra.mxu0 0
    %95 = vmatprep.subr.bf16.mxu0 0
    %96 = vmatpush1.bf16.xpose.msra.mxu0 0
    %97 = vmatprep.subr.bf16.mxu0 0
    %98 = vmatpush1.bf16.xpose.msra.mxu0 0
    %99 = vmatprep.subr.bf16.mxu0 0
    %100 = vmatpush1.bf16.xpose.msra.mxu0 0
    %101 = vmatprep.subr.bf16.mxu0 0
    %102 = vmatpush1.bf16.xpose.msra.mxu0 0
    %103 = vmatprep.subr.bf16.mxu0 0
    %104 = vmatpush1.bf16.xpose.msra.mxu0 0
    %105 = vmatprep.subr.bf16.mxu0 0
    %106 = vmatpush1.bf16.xpose.msra.mxu0 0
    %107 = vmatprep.subr.bf16.mxu0 0
    %108 = vmatpush1.bf16.xpose.msra.mxu0 0
    %109 = vmatprep.subr.bf16.mxu0 0
    %110 = vmatpush1.bf16.xpose.msra.mxu0 0
    %111 = vmatprep.subr.bf16.mxu0 0
    %112 = vmatpush1.bf16.xpose.msra.mxu0 0
    %113 = vmatprep.subr.bf16.mxu0 0
    %114 = vmatpush1.bf16.xpose.msra.mxu0 0
    %115 = vmatprep.subr.bf16.mxu0 0
    %116 = vmatpush1.bf16.xpose.msra.mxu0 0
    %117 = vmatprep.subr.bf16.mxu0 0
    %118 = vmatpush1.bf16.xpose.msra.mxu0 0
    %119 = vmatprep.mubr.bf16.mxu0 0
    %120 = vmatmul.mubr.bf16.gmra.mrb[0].mxu0 %v76
    %v121 = vpop.f32.mrb[0].mxu0
    %v122 = vadd.f32 0.0, %v121
    %v123 = vpop.f32.mrb[0].mxu0
    %v124 = vpop.f32.mrb[0].mxu0
    %v125 = vadd.f32 0.0, %v124
    %v126 = vpop.f32.mrb[0].mxu0
    %127 = vmatprep.mubr.bf16.mxu0 0
    %128 = vmatmul.mubr.bf16.gmra.mrb[0].mxu0 %v79
    %v129 = vpop.f32.mrb[0].mxu0
    %v130 = vadd.f32 0.0, %v129
    %v131 = vpop.f32.mrb[0].mxu0
    %v132 = vpop.f32.mrb[0].mxu0
    %v133 = vadd.f32 0.0, %v132
    %v134 = vpop.f32.mrb[0].mxu0
    %135 = vdwg.mxu0
    %v136 = vld [vmem:[%s2] sm:$0x1]
    %v137 = vld [vmem:[%s2 + $0x1] sm:$0x1]
    %v140 = vlaneseq
    %v141 = vshrl.u32 %v140, 7
    %v142 = vsub.s32 0, %v141
    %v143 = vrot.slane %v136, %v142
    %v144 = vlaneseq
    %v145 = vshrl.u32 %v144, 7
    %v146 = vsub.s32 0, %v145
    %v147 = vrot.slane %v137, %v146
    %v150 = vadd.f32 %v122, %v143
    %v151 = vadd.f32 %v125, %v143
    %v152 = vadd.f32 %v130, %v147
    %v153 = vadd.f32 %v133, %v147
    %v154 = vld [vmem:[%s3] sm:$0x1]
    %v155 = vld [vmem:[%s3 + $0x1] sm:$0x1]
    %vm156 = vcmask 253952
    %157 = vst.msk [vmem:[%s4] sm:$0x1] %vm156, %v154
    %158 = vst.msk [vmem:[%s4 + $0x18] sm:$0x1] %vm156, %v155
    %vm159 = vcmask 261120
    %160 = vst.msk [vmem:[%s4 + $0x1] sm:$0xff] %vm159, %v150
    %161 = vst.msk [vmem:[%s4 + $0x9] sm:$0xff] %vm159, %v151
    %162 = vst.msk [vmem:[%s4 + $0x19] sm:$0xff] %vm159, %v152
    %163 = vst.msk [vmem:[%s4 + $0x21] sm:$0xff] %vm159, %v153
    // Predicated region
    $region26: #{tpu_custom_call.1} parent=1 // pred_check
      _
    $region27: #{tpu_custom_call.1} parent=1 // pred_check_branch
      %165 = sbr.rel (0) target = $region29
    $region28: #{tpu_custom_call.1} parent=1 // pred_region
      _
    $region29: #{tpu_custom_call.1} parent=1 // pred_fallthru
      _
    // Predicated region
    $region30: #{tpu_custom_call.1} parent=1 // pred_check
      _
    $region31: #{tpu_custom_call.1} parent=1 // pred_check_branch
      %167 = sbr.rel (0) target = $region33
    $region32: #{tpu_custom_call.1} parent=1 // pred_region
      _
    $region33: #{tpu_custom_call.1} parent=1 // pred_fallthru
      _
    %168 = vsyncpa [#allocation3], 1
    %169 = vsyncpa [#allocation5], 1

</llo_original>
